<compile_context>
chip_gen: v7x
topology: tpu7x:2x2x1
jax: 0.10.0
libtpu: 0.0.40
codegen_flags: <defaults>
</compile_context>

<pallas_src>
import jax
import jax.numpy as jnp
from jax.experimental import pallas as pl
from jax.experimental.pallas import tpu as pltpu

TEMPERATURE = 0.07
INV_TEMPERATURE = 1.0 / TEMPERATURE
LN_EPS = 1e-5
NORM_EPS = 1e-12


def _contrastive_kernel(e1_ref, e2_ref, wd_ref, w_ref, v_ref, out_ref, x_scr):
    B, D = e1_ref.shape
    D2 = D // 2

    # ---- unpack the packed parameter operands (static slices, packed once at init) ----
    W = w_ref[...]                       # (D, D + D2) = [W1 | W2]
    w1 = W[:, :D]                        # (D, D)
    w2 = W[:, D:]                        # (D, D2)
    V = v_ref[...]                       # (4, D)
    b1 = V[0:1, :]                       # (1, D)
    b2 = V[1:2, :D2]                     # (1, D2)
    gamma = V[2:3, :D2]                  # (1, D2)
    beta = V[3:4, :D2]                   # (1, D2)

    # ---- stack both views in-kernel: [e1; e2] -> (2B, D) (two aligned row-block stores) ----
    x_scr[0:B, :] = e1_ref[...]
    x_scr[B:2 * B, :] = e2_ref[...]
    x = x_scr[...]

    # ---- fused projection head on the stacked batch (single MXU pass per layer) ----
    h = jnp.maximum(jnp.dot(x, w1, preferred_element_type=jnp.float32) + b1, 0.0)   # Linear + ReLU
    p = jnp.dot(h, w2, preferred_element_type=jnp.float32) + b2                      # Linear

    # LayerNorm over last dim (elementwise affine, eps=1e-5), f32
    mu = jnp.mean(p, axis=-1, keepdims=True)
    var = jnp.mean((p - mu) * (p - mu), axis=-1, keepdims=True)
    p = (p - mu) * jax.lax.rsqrt(var + LN_EPS) * gamma + beta

    # F.normalize(dim=1): x / max(||x||, eps) == x * rsqrt(max(sum x^2, eps^2))
    sumsq = jnp.sum(p * p, axis=-1, keepdims=True)
    p = p * jax.lax.rsqrt(jnp.maximum(sumsq, NORM_EPS * NORM_EPS))

    p1 = p[:B]                           # (B, D2)
    p2 = p[B:]                           # (B, D2)

    # Similarity in both orientations via two tiny MXU pushes (MXU has huge slack here).
    # This keeps every LSE reduction lane-wise (axis=-1) and off the XLU, and no explicit
    # transpose is ever materialized.
    sim12 = jax.lax.dot_general(p1, p2, (((1,), (1,)), ((), ())),
                                preferred_element_type=jnp.float32) * INV_TEMPERATURE  # sim
    sim21 = jax.lax.dot_general(p2, p1, (((1,), (1,)), ((), ())),
                                preferred_element_type=jnp.float32) * INV_TEMPERATURE  # sim.T

    # diag(sim) directly from p1*p2 (no iota / eye / masked (B,B) reduce)
    d = jnp.sum(p1 * p2, axis=-1, keepdims=True) * INV_TEMPERATURE                    # (B, 1)

    # row-wise cross-entropy with labels=arange:  loss_12[i] = lse(sim[i,:])  - sim[i,i]
    m12 = jnp.max(sim12, axis=-1, keepdims=True)
    lse12 = jnp.log(jnp.sum(jnp.exp(sim12 - m12), axis=-1, keepdims=True)) + m12      # (B, 1)
    # column-wise cross-entropy:                  loss_21[j] = lse(sim[:,j])  - sim[j,j]
    m21 = jnp.max(sim21, axis=-1, keepdims=True)
    lse21 = jnp.log(jnp.sum(jnp.exp(sim21 - m21), axis=-1, keepdims=True)) + m21      # (B, 1)

    wd = wd_ref[...]                                                                   # (B, 1)

    # total = sum_i w_i * (lse_r_i + lse_c_i - 2*sim_ii) / (2 * clamp(sum_i w_i, 1))
    num = jnp.sum((lse12 + lse21 - 2.0 * d) * wd, keepdims=True)                       # (1, 1)
    denom = jnp.maximum(jnp.sum(wd, keepdims=True), 1.0)                               # (1, 1)
    loss = num * 0.5 / denom                                                           # exact divide

    out_ref[0, 0] = loss[0, 0]


def contrastive_loss(emb1, emb2, positive_pairs, params):
    """emb1, emb2: (B, D) float; positive_pairs: (B, B) bool or float; params: packed tuple."""
    w_packed, v_packed = params
    B, D = emb1.shape

    # Only the diagonal of positive_pairs is used by the reference forward; ship it once
    # as a single (B, 1) column (one small operand / DMA). If positive_pairs is static,
    # this can be hoisted to init time.
    wd = jnp.diagonal(positive_pairs).astype(jnp.float32).reshape(B, 1)

    out = pl.pallas_call(
        _contrastive_kernel,
        out_shape=jax.ShapeDtypeStruct((1, 1), jnp.float32),
        out_specs=pl.BlockSpec(memory_space=pltpu.MemorySpace.SMEM),
        scratch_shapes=[pltpu.VMEM((2 * B, D), jnp.float32)],
        # no grid: every operand is a single full-array VMEM block
    )(emb1.astype(jnp.float32), emb2.astype(jnp.float32), wd, w_packed, v_packed)
    return out[0, 0]


def init_params(key, embedding_dim):
    """Projection-head parameters (Linear, ReLU, Linear, LayerNorm), packed for the kernel."""
    d = embedding_dim
    d2 = d // 2
    k1, k2, k3, k4 = jax.random.split(key, 4)
    # weights stored as (in, out)  (PyTorch Linear weight.T)
    w1 = jax.random.normal(k1, (d, d), jnp.float32) / jnp.sqrt(d)
    b1 = 0.01 * jax.random.normal(k2, (1, d), jnp.float32)
    w2 = jax.random.normal(k3, (d, d2), jnp.float32) / jnp.sqrt(d)
    b2 = 0.01 * jax.random.normal(k4, (1, d2), jnp.float32)
    gamma = jnp.ones((1, d2), jnp.float32)
    beta = jnp.zeros((1, d2), jnp.float32)

    # Pack ONCE at init time so the kernel sees only two parameter operands.
    w_packed = jnp.concatenate([w1, w2], axis=1)                       # (d, d + d2)
    pad = lambda v: jnp.pad(v, ((0, 0), (0, d - v.shape[1])))
    v_packed = jnp.concatenate([b1, pad(b2), pad(gamma), pad(beta)], axis=0)  # (4, d)
    return (w_packed, v_packed)


def _reference_loss(emb1, emb2, positive_pairs, params):
    """Pure-JAX reference of the PyTorch forward (for correctness check)."""
    w_packed, v_packed = params
    D = emb1.shape[1]
    D2 = D // 2
    w1, w2 = w_packed[:, :D], w_packed[:, D:]
    b1 = v_packed[0:1, :]
    b2, gamma, beta = v_packed[1:2, :D2], v_packed[2:3, :D2], v_packed[3:4, :D2]

    def head(x):
        h = jnp.maximum(x @ w1 + b1, 0.0)
        p = h @ w2 + b2
        mu = p.mean(-1, keepdims=True)
        var = ((p - mu) ** 2).mean(-1, keepdims=True)
        p = (p - mu) / jnp.sqrt(var + LN_EPS) * gamma + beta
        n = jnp.sqrt((p * p).sum(-1, keepdims=True))
        return p / jnp.maximum(n, NORM_EPS)

    p1, p2 = head(emb1), head(emb2)
    sim = (p1 @ p2.T) * INV_TEMPERATURE
    lse_r = jax.scipy.special.logsumexp(sim, axis=1)
    lse_c = jax.scipy.special.logsumexp(sim, axis=0)
    diag = jnp.diagonal(sim)
    w = jnp.diagonal(positive_pairs).astype(jnp.float32)
    denom = jnp.maximum(w.sum(), 1.0)
    l12 = ((lse_r - diag) * w).sum() / denom
    l21 = ((lse_c - diag) * w).sum() / denom
    return (l12 + l21) / 2.0


# TODO(synk): mine_hard_negatives (topk-based negative mining) is not part of forward() and is
# not implemented here.

if __name__ == "__main__":
    key = jax.random.PRNGKey(0)
    k_e1, k_e2, k_p = jax.random.split(key, 3)

    B = 8            # batch (multiple of 8 so the stacked-row split stays sublane-aligned)
    D = 32           # fusion_output_dim (embedding_dim)

    emb1 = jax.random.normal(k_e1, (B, D), jnp.float32)
    emb2 = jax.random.normal(k_e2, (B, D), jnp.float32)
    # positive pairs: identity matrix (each sample positive with its counterpart)
    positive_pairs = jnp.eye(B, dtype=jnp.bool_)

    params = init_params(k_p, D)

    loss = contrastive_loss(emb1, emb2, positive_pairs, params)
    jax.block_until_ready(loss)

    ref = _reference_loss(emb1, emb2, positive_pairs, params)
    if not jnp.allclose(loss, ref, rtol=1e-4, atol=1e-4):
        raise AssertionError(f"mismatch: kernel={float(loss)} ref={float(ref)}")

    print("KERNEL_OK")
</pallas_src>

<mosaic_0001>
module attributes {stable_mosaic.version = 11 : i64} {
  func.func @_contrastive_kernel(%arg0: memref<8x32xf32, #tpu.memory_space<vmem>>, %arg1: memref<8x32xf32, #tpu.memory_space<vmem>>, %arg2: memref<8x1xf32, #tpu.memory_space<vmem>>, %arg3: memref<32x48xf32, #tpu.memory_space<vmem>>, %arg4: memref<4x32xf32, #tpu.memory_space<vmem>>, %arg5: memref<1x1xf32, #tpu.memory_space<smem>>, %arg6: memref<16x32xf32, #tpu.memory_space<vmem>>) attributes {dimension_semantics = [], scalar_prefetch = 0 : i64, scratch_operands = 1 : i64, tpu.core_type = #tpu.core_type<tc>} {
    %c0 = arith.constant 0 : index
    %c0_0 = arith.constant 0 : index
    %0 = vector.load %arg3[%c0, %c0_0] : memref<32x48xf32, #tpu.memory_space<vmem>>, vector<32x48xf32>
    %1 = vector.extract_strided_slice %0 {offsets = [0, 0], sizes = [32, 32], strides = [1, 1]} : vector<32x48xf32> to vector<32x32xf32>
    %2 = vector.extract_strided_slice %0 {offsets = [0, 32], sizes = [32, 16], strides = [1, 1]} : vector<32x48xf32> to vector<32x16xf32>
    %c0_1 = arith.constant 0 : index
    %c0_2 = arith.constant 0 : index
    %3 = vector.load %arg4[%c0_1, %c0_2] : memref<4x32xf32, #tpu.memory_space<vmem>>, vector<4x32xf32>
    %4 = vector.extract_strided_slice %3 {offsets = [0, 0], sizes = [1, 32], strides = [1, 1]} : vector<4x32xf32> to vector<1x32xf32>
    %5 = vector.extract_strided_slice %3 {offsets = [1, 0], sizes = [1, 16], strides = [1, 1]} : vector<4x32xf32> to vector<1x16xf32>
    %6 = vector.extract_strided_slice %3 {offsets = [2, 0], sizes = [1, 16], strides = [1, 1]} : vector<4x32xf32> to vector<1x16xf32>
    %7 = vector.extract_strided_slice %3 {offsets = [3, 0], sizes = [1, 16], strides = [1, 1]} : vector<4x32xf32> to vector<1x16xf32>
    %c0_3 = arith.constant 0 : index
    %c0_4 = arith.constant 0 : index
    %8 = vector.load %arg0[%c0_3, %c0_4] : memref<8x32xf32, #tpu.memory_space<vmem>>, vector<8x32xf32>
    %c0_5 = arith.constant 0 : index
    %c0_6 = arith.constant 0 : index
    %9 = vector.load %arg6[%c0_5, %c0_6] : memref<16x32xf32, #tpu.memory_space<vmem>>, vector<8x32xf32>
    tpu.vector_store %arg6[%c0_5, %c0_6], %8 {strides = array<i32>} : memref<16x32xf32, #tpu.memory_space<vmem>>, vector<8x32xf32>,
    %c0_7 = arith.constant 0 : index
    %c0_8 = arith.constant 0 : index
    %10 = vector.load %arg1[%c0_7, %c0_8] : memref<8x32xf32, #tpu.memory_space<vmem>>, vector<8x32xf32>
    %c8 = arith.constant 8 : index
    %c0_9 = arith.constant 0 : index
    %11 = vector.load %arg6[%c8, %c0_9] : memref<16x32xf32, #tpu.memory_space<vmem>>, vector<8x32xf32>
    tpu.vector_store %arg6[%c8, %c0_9], %10 {strides = array<i32>} : memref<16x32xf32, #tpu.memory_space<vmem>>, vector<8x32xf32>,
    %c0_10 = arith.constant 0 : index
    %c0_11 = arith.constant 0 : index
    %12 = vector.load %arg6[%c0_10, %c0_11] : memref<16x32xf32, #tpu.memory_space<vmem>>, vector<16x32xf32>
    %cst = arith.constant dense<0.000000e+00> : vector<16x32xf32>
    %13 = tpu.matmul %12, %1, %cst {dimension_numbers = #tpu.dot_dimension_numbers<[1], [0], [0], [1], [0, 0, 1, 1], [], []>} : vector<16x32xf32>, vector<32x32xf32>, vector<16x32xf32> -> vector<16x32xf32>
    %14 = vector.broadcast %4 : vector<1x32xf32> to vector<16x32xf32>
    %15 = arith.addf %13, %14 : vector<16x32xf32>
    %cst_12 = arith.constant 0.000000e+00 : f32
    %16 = vector.broadcast %cst_12 : f32 to vector<16x32xf32>
    %17 = arith.maximumf %15, %16 : vector<16x32xf32>
    %cst_13 = arith.constant dense<0.000000e+00> : vector<16x16xf32>
    %18 = tpu.matmul %17, %2, %cst_13 {dimension_numbers = #tpu.dot_dimension_numbers<[1], [0], [0], [1], [0, 0, 1, 1], [], []>} : vector<16x32xf32>, vector<32x16xf32>, vector<16x16xf32> -> vector<16x16xf32>
    %19 = vector.broadcast %5 : vector<1x16xf32> to vector<16x16xf32>
    %20 = arith.addf %18, %19 : vector<16x16xf32>
    %cst_14 = arith.constant dense<0.000000e+00> : vector<16xf32>
    %21 = vector.multi_reduction <add>, %20, %cst_14 [1] : vector<16x16xf32> to vector<16xf32>
    %22 = vector.shape_cast %21 : vector<16xf32> to vector<16x1xf32>
    %cst_15 = arith.constant 1.600000e+01 : f32
    %23 = vector.broadcast %cst_15 : f32 to vector<16x1xf32>
    %24 = arith.divf %22, %23 : vector<16x1xf32>
    %25 = vector.broadcast %24 : vector<16x1xf32> to vector<16x16xf32>
    %26 = arith.subf %20, %25 : vector<16x16xf32>
    %27 = vector.broadcast %24 : vector<16x1xf32> to vector<16x16xf32>
    %28 = arith.subf %20, %27 : vector<16x16xf32>
    %29 = arith.mulf %26, %28 : vector<16x16xf32>
    %cst_16 = arith.constant dense<0.000000e+00> : vector<16xf32>
    %30 = vector.multi_reduction <add>, %29, %cst_16 [1] : vector<16x16xf32> to vector<16xf32>
    %31 = vector.shape_cast %30 : vector<16xf32> to vector<16x1xf32>
    %cst_17 = arith.constant 1.600000e+01 : f32
    %32 = vector.broadcast %cst_17 : f32 to vector<16x1xf32>
    %33 = arith.divf %31, %32 : vector<16x1xf32>
    %34 = vector.broadcast %24 : vector<16x1xf32> to vector<16x16xf32>
    %35 = arith.subf %20, %34 : vector<16x16xf32>
    %cst_18 = arith.constant 9.99999974E-6 : f32
    %36 = vector.broadcast %cst_18 : f32 to vector<16x1xf32>
    %37 = arith.addf %33, %36 : vector<16x1xf32>
    %38 = math.rsqrt %37 : vector<16x1xf32>
    %39 = vector.broadcast %38 : vector<16x1xf32> to vector<16x16xf32>
    %40 = arith.mulf %35, %39 : vector<16x16xf32>
    %41 = vector.broadcast %6 : vector<1x16xf32> to vector<16x16xf32>
    %42 = arith.mulf %40, %41 : vector<16x16xf32>
    %43 = vector.broadcast %7 : vector<1x16xf32> to vector<16x16xf32>
    %44 = arith.addf %42, %43 : vector<16x16xf32>
    %45 = arith.mulf %44, %44 : vector<16x16xf32>
    %cst_19 = arith.constant dense<0.000000e+00> : vector<16xf32>
    %46 = vector.multi_reduction <add>, %45, %cst_19 [1] : vector<16x16xf32> to vector<16xf32>
    %47 = vector.shape_cast %46 : vector<16xf32> to vector<16x1xf32>
    %cst_20 = arith.constant 1.000000e-24 : f32
    %48 = vector.broadcast %cst_20 : f32 to vector<16x1xf32>
    %49 = arith.maximumf %47, %48 : vector<16x1xf32>
    %50 = math.rsqrt %49 : vector<16x1xf32>
    %51 = vector.broadcast %50 : vector<16x1xf32> to vector<16x16xf32>
    %52 = arith.mulf %44, %51 : vector<16x16xf32>
    %53 = vector.extract_strided_slice %52 {offsets = [0, 0], sizes = [8, 16], strides = [1, 1]} : vector<16x16xf32> to vector<8x16xf32>
    %54 = vector.extract_strided_slice %52 {offsets = [8, 0], sizes = [8, 16], strides = [1, 1]} : vector<16x16xf32> to vector<8x16xf32>
    %cst_21 = arith.constant dense<0.000000e+00> : vector<8x8xf32>
    %55 = tpu.matmul %53, %54, %cst_21 {dimension_numbers = #tpu.dot_dimension_numbers<[1], [1], [0], [0], [0, 0, 1, 0], [], []>} : vector<8x16xf32>, vector<8x16xf32>, vector<8x8xf32> -> vector<8x8xf32>
    %cst_22 = arith.constant 14.2857141 : f32
    %56 = vector.broadcast %cst_22 : f32 to vector<8x8xf32>
    %57 = arith.mulf %55, %56 : vector<8x8xf32>
    %cst_23 = arith.constant dense<0.000000e+00> : vector<8x8xf32>
    %58 = tpu.matmul %54, %53, %cst_23 {dimension_numbers = #tpu.dot_dimension_numbers<[1], [1], [0], [0], [0, 0, 1, 0], [], []>} : vector<8x16xf32>, vector<8x16xf32>, vector<8x8xf32> -> vector<8x8xf32>
    %cst_24 = arith.constant 14.2857141 : f32
    %59 = vector.broadcast %cst_24 : f32 to vector<8x8xf32>
    %60 = arith.mulf %58, %59 : vector<8x8xf32>
    %61 = arith.mulf %53, %54 : vector<8x16xf32>
    %cst_25 = arith.constant dense<0.000000e+00> : vector<8xf32>
    %62 = vector.multi_reduction <add>, %61, %cst_25 [1] : vector<8x16xf32> to vector<8xf32>
    %63 = vector.shape_cast %62 : vector<8xf32> to vector<8x1xf32>
    %cst_26 = arith.constant 14.2857141 : f32
    %64 = vector.broadcast %cst_26 : f32 to vector<8x1xf32>
    %65 = arith.mulf %63, %64 : vector<8x1xf32>
    %cst_27 = arith.constant dense<0xFF800000> : vector<8xf32>
    %66 = vector.multi_reduction <maximumf>, %57, %cst_27 [1] : vector<8x8xf32> to vector<8xf32>
    %67 = vector.shape_cast %66 : vector<8xf32> to vector<8x1xf32>
    %68 = vector.broadcast %67 : vector<8x1xf32> to vector<8x8xf32>
    %69 = arith.subf %57, %68 : vector<8x8xf32>
    %70 = math.exp %69 : vector<8x8xf32>
    %cst_28 = arith.constant dense<0.000000e+00> : vector<8xf32>
    %71 = vector.multi_reduction <add>, %70, %cst_28 [1] : vector<8x8xf32> to vector<8xf32>
    %72 = vector.shape_cast %71 : vector<8xf32> to vector<8x1xf32>
    %73 = math.log %72 : vector<8x1xf32>
    %74 = arith.addf %73, %67 : vector<8x1xf32>
    %cst_29 = arith.constant dense<0xFF800000> : vector<8xf32>
    %75 = vector.multi_reduction <maximumf>, %60, %cst_29 [1] : vector<8x8xf32> to vector<8xf32>
    %76 = vector.shape_cast %75 : vector<8xf32> to vector<8x1xf32>
    %77 = vector.broadcast %76 : vector<8x1xf32> to vector<8x8xf32>
    %78 = arith.subf %60, %77 : vector<8x8xf32>
    %79 = math.exp %78 : vector<8x8xf32>
    %cst_30 = arith.constant dense<0.000000e+00> : vector<8xf32>
    %80 = vector.multi_reduction <add>, %79, %cst_30 [1] : vector<8x8xf32> to vector<8xf32>
    %81 = vector.shape_cast %80 : vector<8xf32> to vector<8x1xf32>
    %82 = math.log %81 : vector<8x1xf32>
    %83 = arith.addf %82, %76 : vector<8x1xf32>
    %c0_31 = arith.constant 0 : index
    %c0_32 = arith.constant 0 : index
    %84 = vector.load %arg2[%c0_31, %c0_32] : memref<8x1xf32, #tpu.memory_space<vmem>>, vector<8x1xf32>
    %85 = arith.addf %74, %83 : vector<8x1xf32>
    %cst_33 = arith.constant 2.000000e+00 : f32
    %86 = vector.broadcast %cst_33 : f32 to vector<8x1xf32>
    %87 = arith.mulf %86, %65 : vector<8x1xf32>
    %88 = arith.subf %85, %87 : vector<8x1xf32>
    %89 = arith.mulf %88, %84 : vector<8x1xf32>
    %90 = vector.shape_cast %89 : vector<8x1xf32> to vector<1x8x1xf32>
    %cst_34 = arith.constant dense<0.000000e+00> : vector<1xf32>
    %91 = vector.multi_reduction <add>, %90, %cst_34 [1, 2] : vector<1x8x1xf32> to vector<1xf32>
    %92 = vector.shape_cast %91 : vector<1xf32> to vector<1x1x1xf32>
    %93 = vector.extract %92[0, 0, 0] : f32 from vector<1x1x1xf32>
    %94 = vector.broadcast %93 : f32 to vector<1x1xf32>
    %95 = vector.shape_cast %84 : vector<8x1xf32> to vector<1x8x1xf32>
    %cst_35 = arith.constant dense<0.000000e+00> : vector<1xf32>
    %96 = vector.multi_reduction <add>, %95, %cst_35 [1, 2] : vector<1x8x1xf32> to vector<1xf32>
    %97 = vector.shape_cast %96 : vector<1xf32> to vector<1x1x1xf32>
    %98 = vector.extract %97[0, 0, 0] : f32 from vector<1x1x1xf32>
    %99 = vector.broadcast %98 : f32 to vector<1x1xf32>
    %cst_36 = arith.constant 1.000000e+00 : f32
    %100 = vector.broadcast %cst_36 : f32 to vector<1x1xf32>
    %101 = arith.maximumf %99, %100 : vector<1x1xf32>
    %cst_37 = arith.constant 5.000000e-01 : f32
    %102 = vector.broadcast %cst_37 : f32 to vector<1x1xf32>
    %103 = arith.mulf %94, %102 : vector<1x1xf32>
    %104 = arith.divf %103, %101 : vector<1x1xf32>
    %105 = vector.extract %104[0, 0] : f32 from vector<1x1xf32>
    %c0_38 = arith.constant 0 : index
    %c0_39 = arith.constant 0 : index
    %106 = memref.load %arg5[%c0_38, %c0_39] : memref<1x1xf32, #tpu.memory_space<smem>>
    memref.store %105, %arg5[%c0_38, %c0_39] : memref<1x1xf32, #tpu.memory_space<smem>>
    return
  }
}

</mosaic_0001>

<llo_original>
// kernel: tpu_custom_call.1
$region0: #{tpu_custom_call.1}
  #allocation0 [shape = 'u32[]', space=smem, size = 0x4, offset = 0x4, fixed_abs, tag = 'smem constant byte address 0x4 - core index']
  #allocation1 [shape = 'u32[144,128]{1,0:T(1,128)}', space=vmem, size = 0x12000, scoped, tag = 'internal scratch']
  #allocation2 [shape = 'f32[16,32]{1,0:T(8,128)}', space=vmem, size = 0x2000, scoped, tag = 'scratch operand']
  %s0 = inlined_call_operand.vmem [shape: f32[8,32], index: 0, kind: input, shape index: {}]
  %s1 = inlined_call_operand.hbm [shape: f32[8,32], index: 1, kind: input, shape index: {}]
  %s2 = inlined_call_operand.vmem [shape: f32[8,1], index: 2, kind: input, shape index: {}]
  %s3 = inlined_call_operand.hbm [shape: f32[32,48], index: 3, kind: input, shape index: {}]
  %s4 = inlined_call_operand.vmem [shape: f32[4,32], index: 4, kind: input, shape index: {}]
  %s5 = inlined_call_operand.hbm [shape: f32[1,1], index: 5, kind: output, shape index: {}]
  %s6 = sld [smem:[#allocation0]]
  $region38: #{tpu_custom_call.1} parent=0
    _
  %s8 = ssub.s32 1, %s6
  %s9 = scalar_select 0, %s8, %s6
  $region1: #{tpu_custom_call.1} parent=0
    #allocation3 [shape = 'u8[4096]{0}', space=vmem, size = 0x1000, scoped, tag = 'input window, operand 1, single buffered']
    #allocation4 [shape = 's32[1]{0}', space=sflag, size = 0x4, scoped, tag = 'scoped memory for tpu_custom_call.1']
    #allocation5 [shape = 's32[1]{0}', space=sflag, size = 0x4, scoped, tag = 'scoped memory for tpu_custom_call.1']
    #allocation6 [shape = 'u8[16384]{0}', space=vmem, size = 0x4000, scoped, tag = 'input window, operand 3, single buffered']
    #allocation7 [shape = 's32[1]{0}', space=sflag, size = 0x4, scoped, tag = 'scoped memory for tpu_custom_call.1']
    #allocation8 [shape = 'u8[512]{0}', space=smem, size = 0x200, scoped, tag = 'output window, operand 0, single buffered']
    %10 = vsyncpa [#allocation4], 0
    %11 = vsyncpa [#allocation7], 0
    %12 = vsyncpa [#allocation5], 0
    // Predicated region
    $region2: #{tpu_custom_call.1} parent=1 // pred_check
      _
    $region3: #{tpu_custom_call.1} parent=1 // pred_check_branch
      %14 = sbr.rel (0) target = $region5
    $region4: #{tpu_custom_call.1} parent=1 // pred_region
      _
    $region5: #{tpu_custom_call.1} parent=1 // pred_fallthru
      _
    // Predicated region
    $region6: #{tpu_custom_call.1} parent=1 // pred_check
      _
    $region7: #{tpu_custom_call.1} parent=1 // pred_check_branch
      %16 = sbr.rel (0) target = $region9
    $region8: #{tpu_custom_call.1} parent=1 // pred_region
      %s18 = ssub.s32 128, 128
      %19 = vsyncadd [#allocation4], %s18
      %s21 = sshll.u32 [#allocation3], 4
      %s22 = int_to_ptr.vmem [resolvable:$true] %s21
      %24 = dma.hbm_to_vmem [thread:$0]  %s1, 128, %s22, [#allocation4]
    $region9: #{tpu_custom_call.1} parent=1 // pred_fallthru
      _
    // Predicated region
    $region10: #{tpu_custom_call.1} parent=1 // pred_check
      _
    $region11: #{tpu_custom_call.1} parent=1 // pred_check_branch
      %26 = sbr.rel (0) target = $region13
    $region12: #{tpu_custom_call.1} parent=1 // pred_region
      _
    $region13: #{tpu_custom_call.1} parent=1 // pred_fallthru
      _
    // Predicated region
    $region14: #{tpu_custom_call.1} parent=1 // pred_check
      _
    $region15: #{tpu_custom_call.1} parent=1 // pred_check_branch
      %28 = sbr.rel (0) target = $region17
    $region16: #{tpu_custom_call.1} parent=1 // pred_region
      %s30 = ssub.s32 512, 512
      %31 = vsyncadd [#allocation7], %s30
      %s32 = sshll.u32 [#allocation6], 4
      %s33 = int_to_ptr.vmem [resolvable:$true] %s32
      %38 = dma.hbm_to_vmem [thread:$0]  %s3, 512, %s33, [#allocation7], 128, 128, 8
    $region17: #{tpu_custom_call.1} parent=1 // pred_fallthru
      _
    // Predicated region
    $region18: #{tpu_custom_call.1} parent=1 // pred_check
      _
    $region19: #{tpu_custom_call.1} parent=1 // pred_check_branch
      %40 = sbr.rel (0) target = $region21
    $region20: #{tpu_custom_call.1} parent=1 // pred_region
      _
    $region21: #{tpu_custom_call.1} parent=1 // pred_fallthru
      _
    // Predicated region
    $region22: #{tpu_custom_call.1} parent=1 // pred_check
      _
    $region23: #{tpu_custom_call.1} parent=1 // pred_check_branch
      %42 = sbr.rel (0) target = $region25
    $region24: #{tpu_custom_call.1} parent=1 // pred_region
      %43 = dma.done [#allocation4], 128
    $region25: #{tpu_custom_call.1} parent=1 // pred_fallthru
      _
    // Predicated region
    $region26: #{tpu_custom_call.1} parent=1 // pred_check
      _
    $region27: #{tpu_custom_call.1} parent=1 // pred_check_branch
      %45 = sbr.rel (0) target = $region29
    $region28: #{tpu_custom_call.1} parent=1 // pred_region
      %46 = dma.done [#allocation7], 512
    $region29: #{tpu_custom_call.1} parent=1 // pred_fallthru
      _
    %v47 = vld [vmem:[#allocation6] sm:$0xff]
    %v48 = vld [vmem:[#allocation6 + $0x8] sm:$0xff]
    %v49 = vld [vmem:[#allocation6 + $0x10] sm:$0xff]
    %v50 = vld [vmem:[#allocation6 + $0x18] sm:$0xff]
    %v51 = vld [vmem:[%s4] sm:$0xf]
    %v52 = vld [vmem:[%s0] sm:$0xff]
    %vm53 = vcmask 261120
    %54 = vst.msk [vmem:[#allocation2] sm:$0xff] %vm53, %v52
    %v55 = vld [vmem:[#allocation3] sm:$0xff]
    %56 = vst.msk [vmem:[#allocation2 + $0x8] sm:$0xff] %vm53, %v55
    %v57 = vld [vmem:[#allocation2] sm:$0xff]
    %v58 = vld [vmem:[#allocation2 + $0x8] sm:$0xff]
    %v59 = vlaneseq
    %v60 = vshrl.u32 %v59, 7
    %v61 = vsub.s32 0, %v60
    %v62 = vrot.slane %v51, %v61
    %v64 = vsel %vm53, %v57, 0
    %v67 = vsel %vm53, %v58, 0
    %69 = vmatprep.subr.mxu0 0.0
    %70 = vmatpush1.msra.mxu0 %v47
    %71 = vmatprep.subr.mxu0 0.0
    %72 = vmatpush1.msra.mxu0 %v48
    %73 = vmatprep.subr.mxu0 0.0
    %74 = vmatpush1.msra.mxu0 %v49
    %75 = vmatprep.subr.mxu0 0.0
    %76 = vmatpush1.msra.mxu0 %v50
    %77 = vmatprep.subr.mxu0 0.0
    %78 = vmatpush1.msra.mxu0 0.0
    %79 = vmatprep.subr.mxu0 0.0
    %80 = vmatpush1.msra.mxu0 0.0
    %81 = vmatprep.subr.mxu0 0.0
    %82 = vmatpush1.msra.mxu0 0.0
    %83 = vmatprep.subr.mxu0 0.0
    %84 = vmatpush1.msra.mxu0 0.0
    %85 = vmatprep.subr.mxu0 0.0
    %86 = vmatpush1.msra.mxu0 0.0
    %87 = vmatprep.subr.mxu0 0.0
    %88 = vmatpush1.msra.mxu0 0.0
    %89 = vmatprep.subr.mxu0 0.0
    %90 = vmatpush1.msra.mxu0 0.0
    %91 = vmatprep.subr.mxu0 0.0
    %92 = vmatpush1.msra.mxu0 0.0
    %93 = vmatprep.subr.mxu0 0.0
    %94 = vmatpush1.msra.mxu0 0.0
    %95 = vmatprep.subr.mxu0 0.0
    %96 = vmatpush1.msra.mxu0 0.0
    %97 = vmatprep.subr.mxu0 0.0
    %98 = vmatpush1.msra.mxu0 0.0
    %99 = vmatprep.subr.mxu0 0.0
    %100 = vmatpush1.msra.mxu0 0.0
    %101 = vmatprep.subr.mxu0 0.0
    %102 = vmatpush1.msra.mxu0 0.0
    %103 = vmatprep.subr.mxu0 0.0
    %104 = vmatpush1.msra.mxu0 0.0
    %105 = vmatprep.subr.mxu0 0.0
    %106 = vmatpush1.msra.mxu0 0.0
    %107 = vmatprep.subr.mxu0 0.0
    %108 = vmatpush1.msra.mxu0 0.0
    %109 = vmatprep.subr.mxu0 0.0
    %110 = vmatpush1.msra.mxu0 0.0
    %111 = vmatprep.subr.mxu0 0.0
    %112 = vmatpush1.msra.mxu0 0.0
    %113 = vmatprep.subr.mxu0 0.0
    %114 = vmatpush1.msra.mxu0 0.0
    %115 = vmatprep.subr.mxu0 0.0
    %116 = vmatpush1.msra.mxu0 0.0
    %117 = vmatprep.subr.mxu0 0.0
    %118 = vmatpush1.msra.mxu0 0.0
    %119 = vmatprep.subr.mxu0 0.0
    %120 = vmatpush1.msra.mxu0 0.0
    %121 = vmatprep.subr.mxu0 0.0
    %122 = vmatpush1.msra.mxu0 0.0
    %123 = vmatprep.subr.mxu0 0.0
    %124 = vmatpush1.msra.mxu0 0.0
    %125 = vmatprep.subr.mxu0 0.0
    %126 = vmatpush1.msra.mxu0 0.0
    %127 = vmatprep.subr.mxu0 0.0
    %128 = vmatpush1.msra.mxu0 0.0
    %129 = vmatprep.subr.mxu0 0.0
    %130 = vmatpush1.msra.mxu0 0.0
    %131 = vmatprep.subr.mxu0 0.0
    %132 = vmatpush1.msra.mxu0 0.0
    %133 = vmatprep.mubr.f32.mxu0 0.0
    %134 = vmatmul.mubr.f32.gmra.mrb[0].mxu0 %v64
    %v135 = vpop.f32.mrb[0].mxu0
    %v136 = vadd.f32 %v62, %v135
    %v137 = vpop.f32.mrb[0].mxu0
    %138 = vmatprep.mubr.f32.mxu0 0.0
    %139 = vmatmul.mubr.f32.gmra.mrb[0].mxu0 %v67
    %v140 = vpop.f32.mrb[0].mxu0
    %v141 = vadd.f32 %v62, %v140
    %v142 = vpop.f32.mrb[0].mxu0
    %143 = vdwg.mxu0
    %v144 = vmax.f32 %v136, 0.0
    %v145 = vmax.f32 %v141, 0.0
    %v146 = vlaneseq
    %v147 = vshrl.u32 %v146, 7
    %v148 = vsub.s32 1, %v147
    %v149 = vrot.slane %v51, %v148
    %154 = vrot.lane.b32.xlu0 %v47, 96
    %v155 = vpop.permute.xlu0 %154
    %156 = vrot.lane.b32.xlu0 %v48, 96
    %v157 = vpop.permute.xlu0 %156
    %158 = vrot.lane.b32.xlu0 %v49, 96
    %v159 = vpop.permute.xlu0 %158
    %160 = vrot.lane.b32.xlu0 %v50, 96
    %v161 = vpop.permute.xlu0 %160
    %v167 = vsel %vm53, %v144, 0
    %v170 = vsel %vm53, %v145, 0
    %172 = vmatprep.subr.mxu0 0.0
    %173 = vmatpush1.msra.mxu0 %v155
    %174 = vmatprep.subr.mxu0 0.0
    %175 = vmatpush1.msra.mxu0 %v157
    %176 = vmatprep.subr.mxu0 0.0
    %177 = vmatpush1.msra.mxu0 %v159
    %178 = vmatprep.subr.mxu0 0.0
    %179 = vmatpush1.msra.mxu0 %v161
    %180 = vmatprep.subr.mxu0 0.0
    %181 = vmatpush1.msra.mxu0 0.0
    %182 = vmatprep.subr.mxu0 0.0
    %183 = vmatpush1.msra.mxu0 0.0
    %184 = vmatprep.subr.mxu0 0.0
    %185 = vmatpush1.msra.mxu0 0.0
    %186 = vmatprep.subr.mxu0 0.0
    %187 = vmatpush1.msra.mxu0 0.0
    %188 = vmatprep.subr.mxu0 0.0
    %189 = vmatpush1.msra.mxu0 0.0
    %190 = vmatprep.subr.mxu0 0.0
    %191 = vmatpush1.msra.mxu0 0.0
    %192 = vmatprep.subr.mxu0 0.0
    %193 = vmatpush1.msra.mxu0 0.0
    %194 = vmatprep.subr.mxu0 0.0
    %195 = vmatpush1.msra.mxu0 0.0
    %196 = vmatprep.subr.mxu0 0.0
    %197 = vmatpush1.msra.mxu0 0.0
    %198 = vmatprep.subr.mxu0 0.0
    %199 = vmatpush1.msra.mxu0 0.0
    %200 = vmatprep.subr.mxu0 0.0
    %201 = vmatpush1.msra.mxu0 0.0
    %202 = vmatprep.subr.mxu0 0.0
    %203 = vmatpush1.msra.mxu0 0.0
    %204 = vmatprep.subr.mxu0 0.0
    %205 = vmatpush1.msra.mxu0 0.0
    %206 = vmatprep.subr.mxu0 0.0
    %207 = vmatpush1.msra.mxu0 0.0
    %208 = vmatprep.subr.mxu0 0.0
    %209 = vmatpush1.msra.mxu0 0.0
    %210 = vmatprep.subr.mxu0 0.0
    %211 = vmatpush1.msra.mxu0 0.0
    %212 = vmatprep.subr.mxu0 0.0
    %213 = vmatpush1.msra.mxu0 0.0
    %214 = vmatprep.subr.mxu0 0.0
    %215 = vmatpush1.msra.mxu0 0.0
    %216 = vmatprep.subr.mxu0 0.0
    %217 = vmatpush1.msra.mxu0 0.0
    %218 = vmatprep.subr.mxu0 0.0
    %219 = vmatpush1.msra.mxu0 0.0
    %220 = vmatprep.subr.mxu0 0.0
    %221 = vmatpush1.msra.mxu0 0.0
    %222 = vmatprep.subr.mxu0 0.0
    %223 = vmatpush1.msra.mxu0 0.0
    %224 = vmatprep.subr.mxu0 0.0
    %225 = vmatpush1.msra.mxu0 0.0
    %226 = vmatprep.subr.mxu0 0.0
    %227 = vmatpush1.msra.mxu0 0.0
    %228 = vmatprep.subr.mxu0 0.0
    %229 = vmatpush1.msra.mxu0 0.0
    %230 = vmatprep.subr.mxu0 0.0
    %231 = vmatpush1.msra.mxu0 0.0
    %232 = vmatprep.subr.mxu0 0.0
    %233 = vmatpush1.msra.mxu0 0.0
    %234 = vmatprep.subr.mxu0 0.0
    %235 = vmatpush1.msra.mxu0 0.0
    %236 = vmatprep.mubr.f32.mxu0 0.0
    %237 = vmatmul.mubr.f32.gmra.mrb[0].mxu0 %v167
    %v238 = vpop.f32.mrb[0].mxu0
    %v239 = vadd.f32 %v149, %v238
    %v240 = vpop.f32.mrb[0].mxu0
    %241 = vmatprep.mubr.f32.mxu0 0.0
    %242 = vmatmul.mubr.f32.gmra.mrb[0].mxu0 %v170
    %v243 = vpop.f32.mrb[0].mxu0
    %v244 = vadd.f32 %v149, %v243
    %v245 = vpop.f32.mrb[0].mxu0
    %246 = vdwg.mxu0
    %vm247 = vcmask 130048
    %v248 = vsel %vm247, %v239, 0.0
    %249 = vadd.xlane.f32.xlu0 %v248
    %v250 = vpop.xlane.xlu0 %249
    %v251 = vsel %vm247, %v244, 0.0
    %252 = vadd.xlane.f32.xlu0 %v251
    %v253 = vpop.xlane.xlu0 %252
    %v254 = vrcp.pop 16.0
    %v255 = vmul.f32 %v250, %v254
    %v256 = vmul.f32 %v253, %v254
    %v257 = vsub.f32 %v239, %v255
    %v258 = vsub.f32 %v244, %v256
    %v259 = vmul.f32 %v257, %v257
    %v260 = vmul.f32 %v258, %v258
    %v261 = vsel %vm247, %v259, 0.0
    %262 = vadd.xlane.f32.xlu0 %v261
    %v263 = vpop.xlane.xlu0 %262
    %v264 = vsel %vm247, %v260, 0.0
    %265 = vadd.xlane.f32.xlu0 %v264
    %v266 = vpop.xlane.xlu0 %265
    %v267 = vmul.f32 %v263, %v254
    %v268 = vmul.f32 %v266, %v254
    %v269 = vadd.f32 %v267, 1e-05
    %v270 = vadd.f32 %v268, 1e-05
    %v271 = vrsqrt.pop %v269
    %v272 = vrsqrt.pop %v270
    %v273 = vmul.f32 %v257, %v271
    %v274 = vmul.f32 %v258, %v272
    %v275 = vlaneseq
    %v276 = vshrl.u32 %v275, 7
    %v277 = vsub.s32 2, %v276
    %v278 = vrot.slane %v51, %v277
    %v279 = vmul.f32 %v273, %v278
    %v280 = vmul.f32 %v274, %v278
    %v281 = vlaneseq
    %v282 = vshrl.u32 %v281, 7
    %v283 = vsub.s32 3, %v282
    %v284 = vrot.slane %v51, %v283
    %v285 = vadd.f32 %v279, %v284
    %v286 = vadd.f32 %v280, %v284
    %v287 = vmul.f32 %v285, %v285
    %v288 = vmul.f32 %v286, %v286
    %v289 = vsel %vm247, %v287, 0.0
    %290 = vadd.xlane.f32.xlu0 %v289
    %v291 = vpop.xlane.xlu0 %290
    %v292 = vsel %vm247, %v288, 0.0
    %293 = vadd.xlane.f32.xlu0 %v292
    %v294 = vpop.xlane.xlu0 %293
    %v295 = vmax.f32 %v291, 1e-24
    %v296 = vmax.f32 %v294, 1e-24
    %v297 = vrsqrt.pop %v295
    %v298 = vrsqrt.pop %v296
    %v299 = vmul.f32 %v285, %v297
    %v300 = vmul.f32 %v286, %v298
    %v302 = vsel %vm247, %v299, 0
    %v305 = vsel %vm247, %v300, 0
    %307 = vmatprep.subr.mxu0 0.0
    %308 = vmatpush1.xpose.msra.mxu0 %v305
    %309 = vmatprep.subr.mxu0 0.0
    %310 = vmatpush1.xpose.msra.mxu0 0.0
    %311 = vmatprep.subr.mxu0 0.0
    %312 = vmatpush1.xpose.msra.mxu0 0.0
    %313 = vmatprep.subr.mxu0 0.0
    %314 = vmatpush1.xpose.msra.mxu0 0.0
    %315 = vmatprep.subr.mxu0 0.0
    %316 = vmatpush1.xpose.msra.mxu0 0.0
    %317 = vmatprep.subr.mxu0 0.0
    %318 = vmatpush1.xpose.msra.mxu0 0.0
    %319 = vmatprep.subr.mxu0 0.0
    %320 = vmatpush1.xpose.msra.mxu0 0.0
    %321 = vmatprep.subr.mxu0 0.0
    %322 = vmatpush1.xpose.msra.mxu0 0.0
    %323 = vmatprep.subr.mxu0 0.0
    %324 = vmatpush1.xpose.msra.mxu0 0.0
    %325 = vmatprep.subr.mxu0 0.0
    %326 = vmatpush1.xpose.msra.mxu0 0.0
    %327 = vmatprep.subr.mxu0 0.0
    %328 = vmatpush1.xpose.msra.mxu0 0.0
    %329 = vmatprep.subr.mxu0 0.0
    %330 = vmatpush1.xpose.msra.mxu0 0.0
    %331 = vmatprep.subr.mxu0 0.0
    %332 = vmatpush1.xpose.msra.mxu0 0.0
    %333 = vmatprep.subr.mxu0 0.0
    %334 = vmatpush1.xpose.msra.mxu0 0.0
    %335 = vmatprep.subr.mxu0 0.0
    %336 = vmatpush1.xpose.msra.mxu0 0.0
    %337 = vmatprep.subr.mxu0 0.0
    %338 = vmatpush1.xpose.msra.mxu0 0.0
    %339 = vmatprep.subr.mxu0 0.0
    %340 = vmatpush1.xpose.msra.mxu0 0.0
    %341 = vmatprep.subr.mxu0 0.0
    %342 = vmatpush1.xpose.msra.mxu0 0.0
    %343 = vmatprep.subr.mxu0 0.0
    %344 = vmatpush1.xpose.msra.mxu0 0.0
    %345 = vmatprep.subr.mxu0 0.0
    %346 = vmatpush1.xpose.msra.mxu0 0.0
    %347 = vmatprep.subr.mxu0 0.0
    %348 = vmatpush1.xpose.msra.mxu0 0.0
    %349 = vmatprep.subr.mxu0 0.0
    %350 = vmatpush1.xpose.msra.mxu0 0.0
    %351 = vmatprep.subr.mxu0 0.0
    %352 = vmatpush1.xpose.msra.mxu0 0.0
    %353 = vmatprep.subr.mxu0 0.0
    %354 = vmatpush1.xpose.msra.mxu0 0.0
    %355 = vmatprep.subr.mxu0 0.0
    %356 = vmatpush1.xpose.msra.mxu0 0.0
    %357 = vmatprep.subr.mxu0 0.0
    %358 = vmatpush1.xpose.msra.mxu0 0.0
    %359 = vmatprep.subr.mxu0 0.0
    %360 = vmatpush1.xpose.msra.mxu0 0.0
    %361 = vmatprep.subr.mxu0 0.0
    %362 = vmatpush1.xpose.msra.mxu0 0.0
    %363 = vmatprep.subr.mxu0 0.0
    %364 = vmatpush1.xpose.msra.mxu0 0.0
    %365 = vmatprep.subr.mxu0 0.0
    %366 = vmatpush1.xpose.msra.mxu0 0.0
    %367 = vmatprep.subr.mxu0 0.0
    %368 = vmatpush1.xpose.msra.mxu0 0.0
    %369 = vmatprep.subr.mxu0 0.0
    %370 = vmatpush1.xpose.msra.mxu0 0.0
    %371 = vmatprep.mubr.f32.mxu0 0.0
    %372 = vmatmul.mubr.f32.gmra.mrb[0].mxu0 %v302
    %v373 = vpop.f32.mrb[0].mxu0
    %v374 = vadd.f32 0.0, %v373
    %v375 = vpop.f32.mrb[0].mxu0
    %376 = vdwg.mxu0
    %v377 = vmul.f32 %v374, 14.285714
    %378 = vmatprep.subr.mxu0 0.0
    %379 = vmatpush1.xpose.msra.mxu0 %v302
    %380 = vmatprep.subr.mxu0 0.0
    %381 = vmatpush1.xpose.msra.mxu0 0.0
    %382 = vmatprep.subr.mxu0 0.0
    %383 = vmatpush1.xpose.msra.mxu0 0.0
    %384 = vmatprep.subr.mxu0 0.0
    %385 = vmatpush1.xpose.msra.mxu0 0.0
    %386 = vmatprep.subr.mxu0 0.0
    %387 = vmatpush1.xpose.msra.mxu0 0.0
    %388 = vmatprep.subr.mxu0 0.0
    %389 = vmatpush1.xpose.msra.mxu0 0.0
    %390 = vmatprep.subr.mxu0 0.0
    %391 = vmatpush1.xpose.msra.mxu0 0.0
    %392 = vmatprep.subr.mxu0 0.0
    %393 = vmatpush1.xpose.msra.mxu0 0.0
    %394 = vmatprep.subr.mxu0 0.0
    %395 = vmatpush1.xpose.msra.mxu0 0.0
    %396 = vmatprep.subr.mxu0 0.0
    %397 = vmatpush1.xpose.msra.mxu0 0.0
    %398 = vmatprep.subr.mxu0 0.0
    %399 = vmatpush1.xpose.msra.mxu0 0.0
    %400 = vmatprep.subr.mxu0 0.0
    %401 = vmatpush1.xpose.msra.mxu0 0.0
    %402 = vmatprep.subr.mxu0 0.0
    %403 = vmatpush1.xpose.msra.mxu0 0.0
    %404 = vmatprep.subr.mxu0 0.0
    %405 = vmatpush1.xpose.msra.mxu0 0.0
    %406 = vmatprep.subr.mxu0 0.0
    %407 = vmatpush1.xpose.msra.mxu0 0.0
    %408 = vmatprep.subr.mxu0 0.0
    %409 = vmatpush1.xpose.msra.mxu0 0.0
    %410 = vmatprep.subr.mxu0 0.0
    %411 = vmatpush1.xpose.msra.mxu0 0.0
    %412 = vmatprep.subr.mxu0 0.0
    %413 = vmatpush1.xpose.msra.mxu0 0.0
    %414 = vmatprep.subr.mxu0 0.0
    %415 = vmatpush1.xpose.msra.mxu0 0.0
    %416 = vmatprep.subr.mxu0 0.0
    %417 = vmatpush1.xpose.msra.mxu0 0.0
    %418 = vmatprep.subr.mxu0 0.0
    %419 = vmatpush1.xpose.msra.mxu0 0.0
    %420 = vmatprep.subr.mxu0 0.0
    %421 = vmatpush1.xpose.msra.mxu0 0.0
    %422 = vmatprep.subr.mxu0 0.0
    %423 = vmatpush1.xpose.msra.mxu0 0.0
    %424 = vmatprep.subr.mxu0 0.0
    %425 = vmatpush1.xpose.msra.mxu0 0.0
    %426 = vmatprep.subr.mxu0 0.0
    %427 = vmatpush1.xpose.msra.mxu0 0.0
    %428 = vmatprep.subr.mxu0 0.0
    %429 = vmatpush1.xpose.msra.mxu0 0.0
    %430 = vmatprep.subr.mxu0 0.0
    %431 = vmatpush1.xpose.msra.mxu0 0.0
    %432 = vmatprep.subr.mxu0 0.0
    %433 = vmatpush1.xpose.msra.mxu0 0.0
    %434 = vmatprep.subr.mxu0 0.0
    %435 = vmatpush1.xpose.msra.mxu0 0.0
    %436 = vmatprep.subr.mxu0 0.0
    %437 = vmatpush1.xpose.msra.mxu0 0.0
    %438 = vmatprep.subr.mxu0 0.0
    %439 = vmatpush1.xpose.msra.mxu0 0.0
    %440 = vmatprep.subr.mxu0 0.0
    %441 = vmatpush1.xpose.msra.mxu0 0.0
    %442 = vmatprep.mubr.f32.mxu0 0.0
    %443 = vmatmul.mubr.f32.gmra.mrb[0].mxu0 %v305
    %v444 = vpop.f32.mrb[0].mxu0
    %v445 = vadd.f32 0.0, %v444
    %v446 = vpop.f32.mrb[0].mxu0
    %447 = vdwg.mxu0
    %v448 = vmul.f32 %v445, 14.285714
    %v449 = vmul.f32 %v299, %v300
    %v450 = vsel %vm247, %v449, 0.0
    %451 = vadd.xlane.f32.xlu0 %v450
    %v452 = vpop.xlane.xlu0 %451
    %v453 = vmul.f32 %v452, 14.285714
    %vm454 = vcmask 64512
    %v455 = vsel %vm454, %v377, -inf
    %456 = vmax.xlane.f32.xlu0 %v455
    %v457 = vpop.xlane.xlu0 %456
    %v458 = vsub.f32 %v377, %v457
    %v459 = vmul.f32 %v458, 1.442695
    %v460 = vpow.pop %v459
    %v461 = vsel %vm454, %v460, 0.0
    %462 = vadd.xlane.f32.xlu0 %v461
    %v463 = vpop.xlane.xlu0 %462
    %v464 = vlog2.pop %v463
    %v465 = vmul.f32 %v464, 0.6931472
    %v466 = vadd.f32 %v465, %v457
    %v467 = vsel %vm454, %v448, -inf
    %468 = vmax.xlane.f32.xlu0 %v467
    %v469 = vpop.xlane.xlu0 %468
    %v470 = vsub.f32 %v448, %v469
    %v471 = vmul.f32 %v470, 1.442695
    %v472 = vpow.pop %v471
    %v473 = vsel %vm454, %v472, 0.0
    %474 = vadd.xlane.f32.xlu0 %v473
    %v475 = vpop.xlane.xlu0 %474
    %v476 = vlog2.pop %v475
    %v477 = vmul.f32 %v476, 0.6931472
    %v478 = vadd.f32 %v477, %v469
    %v479 = vld [vmem:[%s2] sm:$0xff]
    %v480 = vadd.f32 %v466, %v478
    %v481 = vmul.f32 %v453, 2.0
    %v482 = vsub.f32 %v480, %v481
    %v483 = vmul.f32 %v482, %v479
    %vm484 = vcmask 7168
    %v485 = vsel %vm484, %v483, 0.0
    %486 = vadd.xlane.f32.xlu0 %v485
    %v487 = vpop.xlane.xlu0 %486
    %v488 = vrot.slane %v487, 4
    %v489 = vadd.f32 %v487, %v488
    %v490 = vrot.slane %v489, 2
    %v491 = vadd.f32 %v489, %v490
    %v492 = vrot.slane %v491, 1
    %v493 = vadd.f32 %v491, %v492
    %s494 = vtos %v493
    %v495 = vstv %s494
    %v496 = vsel %vm484, %v479, 0.0
    %497 = vadd.xlane.f32.xlu0 %v496
    %v498 = vpop.xlane.xlu0 %497
    %v499 = vrot.slane %v498, 4
    %v500 = vadd.f32 %v498, %v499
    %v501 = vrot.slane %v500, 2
    %v502 = vadd.f32 %v500, %v501
    %v503 = vrot.slane %v502, 1
    %v504 = vadd.f32 %v502, %v503
    %s505 = vtos %v504
    %v506 = vstv %s505
    %v507 = vmax.f32 %v506, 1.0
    %v508 = vmul.f32 %v495, 0.5
    %v509 = vrcp.pop %v507
    %v510 = vmul.f32 %v508, %v509
    %s511 = vtos %v510
    %s512 = scalar_lea.smem [#allocation8], 0
    %513 = sst [smem:[%s512]] %s511
    // Predicated region
    $region30: #{tpu_custom_call.1} parent=1 // pred_check
      _
    $region31: #{tpu_custom_call.1} parent=1 // pred_check_branch
      %515 = sbr.rel (0) target = $region33
    $region32: #{tpu_custom_call.1} parent=1 // pred_region
      %s517 = ssub.s32 16, 16
      %518 = vsyncadd [#allocation5], %s517
      %521 = dma.smem_to_hbm [#allocation8], 16, %s5, [#allocation5]
    $region33: #{tpu_custom_call.1} parent=1 // pred_fallthru
      _
    // Predicated region
    $region34: #{tpu_custom_call.1} parent=1 // pred_check
      _
    $region35: #{tpu_custom_call.1} parent=1 // pred_check_branch
      %523 = sbr.rel (0) target = $region37
    $region36: #{tpu_custom_call.1} parent=1 // pred_region
      %524 = dma.done [#allocation5], 16
    $region37: #{tpu_custom_call.1} parent=1 // pred_fallthru
      _
    %525 = sfence
    %526 = vsyncpa [#allocation4], 1
    %527 = vsyncpa [#allocation7], 1
    %528 = vsyncpa [#allocation5], 1

</llo_original>
